<compile_context>
chip_gen: v7x
topology: tpu7x:2x2x1
jax: 0.10.0
libtpu: 0.0.40
codegen_flags: <defaults>
</compile_context>

<pallas_src>
import functools

import jax
import jax.numpy as jnp
from jax import lax
from jax.experimental import pallas as pl
from jax.experimental.pallas import tpu as pltpu


_VMEM_LIMIT_BYTES = 32 << 20      # safe on every generation (<= v7x's 64 MiB physical)
_LANE_BUDGET_BYTES = 2 << 20      # per x block (input dtype); keeps the double-buffered
                                  # f32 working set of both tiled passes well under the
                                  # 16 MiB v5e scoped default.
_FUSED_MAX_BYTES = 24 << 20       # absolute cap on the fused-path working-set estimate


def _vmem_capacity_bytes():
    """Trace-time VMEM capacity; conservative fallback if the query fails."""
    try:
        return int(pltpu.get_tpu_info().vmem_capacity_bytes)
    except Exception:
        return 64 << 20           # v7x per-TensorCore size (smallest current part)


# ----------------------------- fused kernel -------------------------------- #

def _fused_kernel(x_ref, gamma_ref, beta_ref, o_ref, *, inv_m, eps):
    """Whole-tensor BN forward in one VMEM-resident pass.

    x_ref:      (N, C, HW)    input (any float dtype)
    gamma_ref:  (1, C, 1)     BN weight
    beta_ref:   (1, C, 1)     BN bias with the trailing "- delta" already folded in
    o_ref:      (N, C, HW)    output (input dtype)
    """
    x = x_ref[...].astype(jnp.float32)                      # (N, C, HW)
    # Per-(n, c) lane reduce, then combine over the batch dim -> per-channel.
    s = jnp.sum(x, axis=2, keepdims=True)                   # (N, C, 1)
    sq = jnp.sum(x * x, axis=2, keepdims=True)               # (N, C, 1)
    ch_sum = jnp.sum(s, axis=0, keepdims=True)                # (1, C, 1)
    ch_sq = jnp.sum(sq, axis=0, keepdims=True)                # (1, C, 1)

    mean = ch_sum * inv_m
    # NOTE: E[x^2] - E[x]^2 can cancel if |mean| >> std; fine at 1e-5 parity.
    var = ch_sq * inv_m - mean * mean                         # biased variance
    inv_std = lax.rsqrt(var + eps)

    scale = gamma_ref[...].astype(jnp.float32) * inv_std      # (1, C, 1)
    shift = beta_ref[...].astype(jnp.float32) - mean * scale  # (1, C, 1)
    o_ref[...] = (x * scale + shift).astype(o_ref.dtype)


def _fused_forward(x, gamma, beta_eff, eps):
    N, C, H, W = x.shape
    HW = H * W
    x3 = x.reshape(N, C, HW)                                  # free view, lane-dense
    g3 = gamma.astype(jnp.float32).reshape(1, C, 1)
    b3 = beta_eff.astype(jnp.float32).reshape(1, C, 1)

    kern = functools.partial(_fused_kernel,
                             inv_m=1.0 / float(N * HW), eps=float(eps))
    y3 = pl.pallas_call(
        kern,
        out_shape=jax.ShapeDtypeStruct((N, C, HW), x.dtype),
        compiler_params=pltpu.CompilerParams(vmem_limit_bytes=_VMEM_LIMIT_BYTES),
        cost_estimate=pl.CostEstimate(
            flops=int(6 * x.size),
            transcendentals=int(C),
            bytes_accessed=int(2 * x.size * x.dtype.itemsize)),
    )(x3, g3, b3)
    return y3.reshape(N, C, H, W)


# ----------------------------- tiled kernels ------------------------------- #

def _stats_kernel(x_ref, sum_ref, sq_ref, *, hw, mask_lanes):
    """Accumulate per-row (= per (n, c)) sum / sum-of-squares.

    Grid = (row_tiles, lane_tiles); the lane axis (last) is the reduction
    axis, so the (tile_r, 1) accumulators stay resident in VMEM.
    """
    @pl.when(pl.program_id(1) == 0)
    def _():
        sum_ref[...] = jnp.zeros_like(sum_ref)
        sq_ref[...] = jnp.zeros_like(sq_ref)

    x = x_ref[...].astype(jnp.float32)
    if mask_lanes:
        tile_c = x.shape[1]
        col = pl.program_id(1) * tile_c + lax.broadcasted_iota(jnp.int32, x.shape, 1)
        x = jnp.where(col < hw, x, 0.0)
    sum_ref[...] += jnp.sum(x, axis=1, keepdims=True)
    sq_ref[...] += jnp.sum(x * x, axis=1, keepdims=True)


def _norm_kernel(x_ref, scale_ref, shift_ref, o_ref):
    """y = x * scale + shift; per-row scale/shift broadcast along lanes."""
    x = x_ref[...].astype(jnp.float32)
    o_ref[...] = (x * scale_ref[...] + shift_ref[...]).astype(o_ref.dtype)


def _pick_tiles(R, HW, itemsize, lane_budget_bytes):
    # Rows (second-to-last block dim): multiple of 8 (or full R when R < 8),
    # capped so the parallel row axis has >= 2 blocks whenever R >= 16
    # (v7x megacore sharding).
    tile_r = R if R < 8 else min(256, 8 * max(1, R // 16))

    # Lanes (last block dim): a single full-width block when it fits the
    # per-block budget (always layout-legal), otherwise a multiple of 128
    # under budget, preferring an exact divisor so no tail masking is needed.
    max_lanes = max(128, (lane_budget_bytes // (tile_r * itemsize)) // 128 * 128)
    if HW <= max_lanes:
        tile_c = HW
    else:
        tile_c = max_lanes
        t = max_lanes
        while t >= max(128, max_lanes // 2):
            if HW % t == 0:
                tile_c = t
                break
            t -= 128
    mask_lanes = (HW % tile_c) != 0
    return tile_r, tile_c, mask_lanes


def _tiled_forward(x, gamma, beta_eff, eps, lane_budget_bytes):
    N, C, H, W = x.shape
    HW, R = H * W, N * C
    itemsize = x.dtype.itemsize

    # Free view (no transpose): NCHW is contiguous, so (N, C, H, W) ->
    # (N*C, H*W) keeps H*W on the 128-wide lane axis (lane-dense loads/stores).
    x2 = x.reshape(R, HW)

    tile_r, tile_c, mask_lanes = _pick_tiles(R, HW, itemsize, lane_budget_bytes)
    grid = (pl.cdiv(R, tile_r), pl.cdiv(HW, tile_c))

    # ---- pass 1: per-row sum / sum-of-squares (reduction over lane tiles) --
    stats_kernel = functools.partial(_stats_kernel, hw=HW, mask_lanes=mask_lanes)
    s, sq = pl.pallas_call(
        stats_kernel,
        out_shape=(jax.ShapeDtypeStruct((R, 1), jnp.float32),
                   jax.ShapeDtypeStruct((R, 1), jnp.float32)),
        grid=grid,
        in_specs=[pl.BlockSpec((tile_r, tile_c), lambda r, c: (r, c))],
        out_specs=(pl.BlockSpec((tile_r, 1), lambda r, c: (r, 0)),
                   pl.BlockSpec((tile_r, 1), lambda r, c: (r, 0))),
        compiler_params=pltpu.CompilerParams(
            dimension_semantics=("parallel", "arbitrary"),
            vmem_limit_bytes=_VMEM_LIMIT_BYTES),
        cost_estimate=pl.CostEstimate(
            flops=int(3 * x.size), transcendentals=0,
            bytes_accessed=int(x.size * itemsize + 8 * R)),
    )(x2)

    # ---- tiny scalar glue: fold BN params into per-row scale / shift -------
    # (negligible vs. the HBM-bound passes at the sizes that reach this path;
    # the fused fast path above covers small shapes where launch overhead
    # would dominate.)
    m = jnp.float32(N * HW)
    ch_sum = s.reshape(N, C).sum(axis=0)
    ch_sq = sq.reshape(N, C).sum(axis=0)
    mean = ch_sum / m
    var = ch_sq / m - mean * mean                 # biased variance (PyTorch BN)
    inv_std = lax.rsqrt(var + eps)
    scale = gamma.astype(jnp.float32) * inv_std
    shift = beta_eff.astype(jnp.float32) - mean * scale
    scale_rows = jnp.tile(scale, (N,)).reshape(R, 1)   # row n*C + c -> channel c
    shift_rows = jnp.tile(shift, (N,)).reshape(R, 1)

    # ---- pass 2: fused normalize + affine (lane-dense elementwise) ---------
    y2 = pl.pallas_call(
        _norm_kernel,
        out_shape=jax.ShapeDtypeStruct((R, HW), x.dtype),
        grid=grid,
        in_specs=[pl.BlockSpec((tile_r, tile_c), lambda r, c: (r, c)),
                  pl.BlockSpec((tile_r, 1), lambda r, c: (r, 0)),
                  pl.BlockSpec((tile_r, 1), lambda r, c: (r, 0))],
        out_specs=pl.BlockSpec((tile_r, tile_c), lambda r, c: (r, c)),
        compiler_params=pltpu.CompilerParams(
            dimension_semantics=("parallel", "parallel"),
            vmem_limit_bytes=_VMEM_LIMIT_BYTES),
        cost_estimate=pl.CostEstimate(
            flops=int(2 * x.size), transcendentals=0,
            bytes_accessed=int(2 * x.size * itemsize + 8 * R)),
    )(x2, scale_rows, shift_rows)

    return y2.reshape(N, C, H, W)


# ----------------------------- wrapper ------------------------------------- #

def trans_layer_rule9_forward(x, gamma, bias, delta, eps=1e-5, *,
                              force_path=None,
                              lane_budget_bytes=_LANE_BUDGET_BYTES):
    """Forward of TransLayer_rule9: BatchNorm2d(train-mode; weight=gamma,
    bias=bias)(x) - delta, with batch statistics.

    `bias` is the module's stored bias (i.e. already includes +delta, as the
    PyTorch __init__ does); the trailing "- delta" is folded into the shift.
    """
    beta_eff = bias.astype(jnp.float32) - delta

    if force_path == "fused":
        use_fused = True
    elif force_path == "tiled":
        use_fused = False
    else:
        # Generation-aware gate: x block + f32 temporaries + output block.
        est = x.size * (2 * x.dtype.itemsize + 12)
        use_fused = est <= min(_vmem_capacity_bytes() // 2, _FUSED_MAX_BYTES)

    if use_fused:
        return _fused_forward(x, gamma, beta_eff, eps)
    return _tiled_forward(x, gamma, beta_eff, eps, lane_budget_bytes)


# ----------------------------- reference ----------------------------------- #

def _reference(x, gamma, bias, delta, eps=1e-5):
    mean = jnp.mean(x, axis=(0, 2, 3), keepdims=True)
    var = jnp.mean((x - mean) ** 2, axis=(0, 2, 3), keepdims=True)
    g = gamma.reshape(1, -1, 1, 1)
    b = bias.reshape(1, -1, 1, 1)
    y = (x - mean) / jnp.sqrt(var + eps) * g + b
    return y - delta


# ------------------------------- main --------------------------------------- #

if __name__ == "__main__":
    key = jax.random.PRNGKey(0)
    k_x, k_g, k_b, k_d, k_x2, k_g2, k_b2 = jax.random.split(key, 7)

    # --- demo shape from the module (BatchNorm2d on a small NCHW tensor) ----
    N, C, H, W = 2, 4, 16, 16
    x = jax.random.normal(k_x, (N, C, H, W), dtype=jnp.float32)

    DELTA = 0.5
    gamma = 1.0 + 0.1 * jax.random.normal(k_g, (C,), dtype=jnp.float32)  # BN weight
    beta0 = 0.1 * jax.random.normal(k_b, (C,), dtype=jnp.float32)        # original bias
    delta = jax.random.uniform(k_d, (), jnp.float32, -DELTA, DELTA)      # rule9 delta
    bn_bias = beta0 + delta                                              # __init__ side effect

    ref = _reference(x, gamma, bn_bias, delta)

    # 1) auto path (fused single-call fast path at this size)
    out = jax.block_until_ready(trans_layer_rule9_forward(x, gamma, bn_bias, delta))
    assert out.shape == (N, C, H, W)
    assert jnp.allclose(out, ref, atol=1e-5, rtol=1e-5)

    # 2) tiled two-pass path on the same input
    out_t = jax.block_until_ready(
        trans_layer_rule9_forward(x, gamma, bn_bias, delta, force_path="tiled"))
    assert jnp.allclose(out_t, ref, atol=1e-5, rtol=1e-5)

    # 3) tiled path with a tiny lane budget to exercise a real multi-tile grid
    #    (multiple row blocks -> megacore-shardable; multiple lane blocks ->
    #    resident-accumulator reduction across the lane axis).
    N2, C2, H2, W2 = 4, 8, 32, 32
    x2 = jax.random.normal(k_x2, (N2, C2, H2, W2), dtype=jnp.float32)
    g2 = 1.0 + 0.1 * jax.random.normal(k_g2, (C2,), dtype=jnp.float32)
    b2 = 0.1 * jax.random.normal(k_b2, (C2,), dtype=jnp.float32) + delta
    out2 = jax.block_until_ready(
        trans_layer_rule9_forward(x2, g2, b2, delta, force_path="tiled",
                                  lane_budget_bytes=16 * 1024))
    ref2 = _reference(x2, g2, b2, delta)
    assert jnp.allclose(out2, ref2, atol=1e-4, rtol=1e-4)

    print("KERNEL_OK")
</pallas_src>

<mosaic_0001>
module attributes {stable_mosaic.version = 11 : i64} {
  func.func @_fused_kernel(%arg0: memref<2x4x256xf32, #tpu.memory_space<vmem>>, %arg1: memref<1x4x1xf32, #tpu.memory_space<vmem>>, %arg2: memref<1x4x1xf32, #tpu.memory_space<vmem>>, %arg3: memref<2x4x256xf32, #tpu.memory_space<vmem>>) attributes {dimension_semantics = [], scalar_prefetch = 0 : i64, scratch_operands = 0 : i64, tpu.core_type = #tpu.core_type<tc>} {
    %c0 = arith.constant 0 : index
    %c0_0 = arith.constant 0 : index
    %c0_1 = arith.constant 0 : index
    %0 = vector.load %arg0[%c0, %c0_0, %c0_1] : memref<2x4x256xf32, #tpu.memory_space<vmem>>, vector<2x4x256xf32>
    %cst = arith.constant dense<0.000000e+00> : vector<2x4xf32>
    %1 = vector.multi_reduction <add>, %0, %cst [2] : vector<2x4x256xf32> to vector<2x4xf32>
    %2 = vector.shape_cast %1 : vector<2x4xf32> to vector<2x4x1xf32>
    %3 = arith.mulf %0, %0 : vector<2x4x256xf32>
    %cst_2 = arith.constant dense<0.000000e+00> : vector<2x4xf32>
    %4 = vector.multi_reduction <add>, %3, %cst_2 [2] : vector<2x4x256xf32> to vector<2x4xf32>
    %5 = vector.shape_cast %4 : vector<2x4xf32> to vector<2x4x1xf32>
    %cst_3 = arith.constant dense<0.000000e+00> : vector<4x1xf32>
    %6 = vector.multi_reduction <add>, %2, %cst_3 [0] : vector<2x4x1xf32> to vector<4x1xf32>
    %7 = vector.shape_cast %6 : vector<4x1xf32> to vector<1x4x1xf32>
    %cst_4 = arith.constant dense<0.000000e+00> : vector<4x1xf32>
    %8 = vector.multi_reduction <add>, %5, %cst_4 [0] : vector<2x4x1xf32> to vector<4x1xf32>
    %9 = vector.shape_cast %8 : vector<4x1xf32> to vector<1x4x1xf32>
    %cst_5 = arith.constant 0.001953125 : f32
    %10 = vector.broadcast %cst_5 : f32 to vector<1x4x1xf32>
    %11 = arith.mulf %7, %10 : vector<1x4x1xf32>
    %cst_6 = arith.constant 0.001953125 : f32
    %12 = vector.broadcast %cst_6 : f32 to vector<1x4x1xf32>
    %13 = arith.mulf %9, %12 : vector<1x4x1xf32>
    %14 = arith.mulf %11, %11 : vector<1x4x1xf32>
    %15 = arith.subf %13, %14 : vector<1x4x1xf32>
    %cst_7 = arith.constant 9.99999974E-6 : f32
    %16 = vector.broadcast %cst_7 : f32 to vector<1x4x1xf32>
    %17 = arith.addf %15, %16 : vector<1x4x1xf32>
    %18 = math.rsqrt %17 : vector<1x4x1xf32>
    %c0_8 = arith.constant 0 : index
    %c0_9 = arith.constant 0 : index
    %c0_10 = arith.constant 0 : index
    %19 = vector.load %arg1[%c0_8, %c0_9, %c0_10] : memref<1x4x1xf32, #tpu.memory_space<vmem>>, vector<1x4x1xf32>
    %20 = arith.mulf %19, %18 : vector<1x4x1xf32>
    %c0_11 = arith.constant 0 : index
    %c0_12 = arith.constant 0 : index
    %c0_13 = arith.constant 0 : index
    %21 = vector.load %arg2[%c0_11, %c0_12, %c0_13] : memref<1x4x1xf32, #tpu.memory_space<vmem>>, vector<1x4x1xf32>
    %22 = arith.mulf %11, %20 : vector<1x4x1xf32>
    %23 = arith.subf %21, %22 : vector<1x4x1xf32>
    %24 = vector.broadcast %20 : vector<1x4x1xf32> to vector<2x4x256xf32>
    %25 = arith.mulf %0, %24 : vector<2x4x256xf32>
    %26 = vector.broadcast %23 : vector<1x4x1xf32> to vector<2x4x256xf32>
    %27 = arith.addf %25, %26 : vector<2x4x256xf32>
    %c0_14 = arith.constant 0 : index
    %c0_15 = arith.constant 0 : index
    %c0_16 = arith.constant 0 : index
    %28 = vector.load %arg3[%c0_14, %c0_15, %c0_16] : memref<2x4x256xf32, #tpu.memory_space<vmem>>, vector<2x4x256xf32>
    tpu.vector_store %arg3[%c0_14, %c0_15, %c0_16], %27 {strides = array<i32>} : memref<2x4x256xf32, #tpu.memory_space<vmem>>, vector<2x4x256xf32>,
    return
  }
}

</mosaic_0001>

<llo_original>
// kernel: tpu_custom_call.1
$region0: #{tpu_custom_call.1}
  #allocation0 [shape = 'u32[]', space=smem, size = 0x4, offset = 0x4, fixed_abs, tag = 'smem constant byte address 0x4 - core index']
  #allocation1 [shape = 'u32[144,128]{1,0:T(1,128)}', space=vmem, size = 0x12000, scoped, tag = 'internal scratch']
  %s0 = inlined_call_operand.hbm [shape: f32[2,4,256], index: 0, kind: input, shape index: {}]
  %s1 = inlined_call_operand.vmem [shape: f32[1,4,1], index: 1, kind: input, shape index: {}]
  %s2 = inlined_call_operand.vmem [shape: f32[1,4,1], index: 2, kind: input, shape index: {}]
  %s3 = inlined_call_operand.hbm [shape: f32[2,4,256], index: 3, kind: output, shape index: {}]
  %s4 = sld [smem:[#allocation0]]
  $region26: #{tpu_custom_call.1} parent=0
    _
  %s6 = ssub.s32 1, %s4
  %s7 = scalar_select 0, %s6, %s4
  $region1: #{tpu_custom_call.1} parent=0
    #allocation2 [shape = 'u8[8192]{0}', space=vmem, size = 0x2000, scoped, tag = 'input window, operand 0, single buffered']
    #allocation3 [shape = 's32[1]{0}', space=sflag, size = 0x4, scoped, tag = 'scoped memory for tpu_custom_call.1']
    #allocation4 [shape = 's32[1]{0}', space=sflag, size = 0x4, scoped, tag = 'scoped memory for tpu_custom_call.1']
    #allocation5 [shape = 'u8[8192]{0}', space=vmem, size = 0x2000, scoped, tag = 'output window, operand 0, single buffered']
    %8 = vsyncpa [#allocation3], 0
    %9 = vsyncpa [#allocation4], 0
    // Predicated region
    $region2: #{tpu_custom_call.1} parent=1 // pred_check
      _
    $region3: #{tpu_custom_call.1} parent=1 // pred_check_branch
      %11 = sbr.rel (0) target = $region5
    $region4: #{tpu_custom_call.1} parent=1 // pred_region
      %s13 = ssub.s32 256, 256
      %14 = vsyncadd [#allocation3], %s13
      %s15 = sshll.u32 [#allocation2], 4
      %s16 = int_to_ptr.vmem [resolvable:$true] %s15
      %21 = dma.hbm_to_vmem [thread:$0]  %s0, 256, %s16, [#allocation3], 128, 128, 8
    $region5: #{tpu_custom_call.1} parent=1 // pred_fallthru
      _
    // Predicated region
    $region6: #{tpu_custom_call.1} parent=1 // pred_check
      _
    $region7: #{tpu_custom_call.1} parent=1 // pred_check_branch
      %23 = sbr.rel (0) target = $region9
    $region8: #{tpu_custom_call.1} parent=1 // pred_region
      _
    $region9: #{tpu_custom_call.1} parent=1 // pred_fallthru
      _
    // Predicated region
    $region10: #{tpu_custom_call.1} parent=1 // pred_check
      _
    $region11: #{tpu_custom_call.1} parent=1 // pred_check_branch
      %25 = sbr.rel (0) target = $region13
    $region12: #{tpu_custom_call.1} parent=1 // pred_region
      _
    $region13: #{tpu_custom_call.1} parent=1 // pred_fallthru
      _
    // Predicated region
    $region14: #{tpu_custom_call.1} parent=1 // pred_check
      _
    $region15: #{tpu_custom_call.1} parent=1 // pred_check_branch
      %27 = sbr.rel (0) target = $region17
    $region16: #{tpu_custom_call.1} parent=1 // pred_region
      %28 = dma.done [#allocation3], 256
    $region17: #{tpu_custom_call.1} parent=1 // pred_fallthru
      _
    %v29 = vld [vmem:[#allocation2] sm:$0xff]
    %v30 = vld [vmem:[#allocation2 + $0x8] sm:$0xff]
    %v33 = vcombine.high %v29, %v29
    %v34 = vcombine.high %v30, %v30
    %vm37 = vcmask 1043456
    %v38 = vsel %vm37, %v29, 0.0
    %v39 = vsel %vm37, %v33, 0.0
    %v40 = vadd.f32 %v38, %v39
    %41 = vadd.xlane.f32.xlu0 %v40
    %v42 = vpop.xlane.xlu0 %41
    %v43 = vsel %vm37, %v30, 0.0
    %v44 = vsel %vm37, %v34, 0.0
    %v45 = vadd.f32 %v43, %v44
    %46 = vadd.xlane.f32.xlu0 %v45
    %v47 = vpop.xlane.xlu0 %46
    %v48 = vmul.f32 %v29, %v29
    %v49 = vmul.f32 %v30, %v30
    %v52 = vcombine.high %v48, %v48
    %v53 = vcombine.high %v49, %v49
    %v56 = vsel %vm37, %v48, 0.0
    %v57 = vsel %vm37, %v52, 0.0
    %v58 = vadd.f32 %v56, %v57
    %59 = vadd.xlane.f32.xlu0 %v58
    %v60 = vpop.xlane.xlu0 %59
    %v61 = vsel %vm37, %v49, 0.0
    %v62 = vsel %vm37, %v53, 0.0
    %v63 = vadd.f32 %v61, %v62
    %64 = vadd.xlane.f32.xlu0 %v63
    %v65 = vpop.xlane.xlu0 %64
    %v66 = vsel %vm37, %v42, 0.0
    %v67 = vsel %vm37, %v47, 0.0
    %v68 = vadd.f32 %v66, %v67
    %v69 = vsel %vm37, %v60, 0.0
    %v70 = vsel %vm37, %v65, 0.0
    %v71 = vadd.f32 %v69, %v70
    %v72 = vmul.f32 %v68, 0.001953125
    %v73 = vmul.f32 %v71, 0.001953125
    %v74 = vmul.f32 %v72, %v72
    %v75 = vsub.f32 %v73, %v74
    %v76 = vadd.f32 %v75, 1e-05
    %v77 = vrsqrt.pop %v76
    %v78 = vld [vmem:[%s1] sm:$0xf]
    %v79 = vmul.f32 %v78, %v77
    %v80 = vld [vmem:[%s2] sm:$0xf]
    %v81 = vmul.f32 %v72, %v79
    %v82 = vsub.f32 %v80, %v81
    %84 = vset.pattern.permute.xlu0 0
    %85 = vperm.xlu0 %84, %v79
    %v86 = vpop.permute.xlu0 %85
    %v88 = vunpack.c.l.s4 839922192
    %v89 = vunpack.c.0.s8 %v88
    %v90 = vlaneseq
    %v91 = vshrl.u32 %v90, 7
    %v92 = vsub.s32 %v89, %v91
    %v93 = vrot.slane %v86, %v92
    %v95 = vmul.f32 %v29, %v93
    %v96 = vmul.f32 %v30, %v93
    %98 = vset.pattern.permute.xlu0 0
    %99 = vperm.xlu0 %98, %v82
    %v100 = vpop.permute.xlu0 %99
    %v102 = vunpack.c.l.s4 839922192
    %v103 = vunpack.c.0.s8 %v102
    %v104 = vlaneseq
    %v105 = vshrl.u32 %v104, 7
    %v106 = vsub.s32 %v103, %v105
    %v107 = vrot.slane %v100, %v106
    %v109 = vadd.f32 %v95, %v107
    %v110 = vadd.f32 %v96, %v107
    %111 = vst [vmem:[#allocation5] sm:$0xff] %v109
    %112 = vst [vmem:[#allocation5 + $0x8] sm:$0xff] %v110
    // Predicated region
    $region18: #{tpu_custom_call.1} parent=1 // pred_check
      _
    $region19: #{tpu_custom_call.1} parent=1 // pred_check_branch
      %114 = sbr.rel (0) target = $region21
    $region20: #{tpu_custom_call.1} parent=1 // pred_region
      %s116 = ssub.s32 256, 256
      %117 = vsyncadd [#allocation4], %s116
      %s118 = sshll.u32 [#allocation5], 4
      %s119 = int_to_ptr.vmem [resolvable:$true] %s118
      %124 = dma.vmem_to_hbm [thread:$0]  %s119, 256, %s3, [#allocation4], 128, 128, 8
    $region21: #{tpu_custom_call.1} parent=1 // pred_fallthru
      _
    // Predicated region
    $region22: #{tpu_custom_call.1} parent=1 // pred_check
      _
    $region23: #{tpu_custom_call.1} parent=1 // pred_check_branch
      %126 = sbr.rel (0) target = $region25
    $region24: #{tpu_custom_call.1} parent=1 // pred_region
      %127 = dma.done [#allocation4], 256
    $region25: #{tpu_custom_call.1} parent=1 // pred_fallthru
      _
    %128 = vsyncpa [#allocation3], 1
    %129 = vsyncpa [#allocation4], 1

</llo_original>
